<compile_context>
chip_gen: v7x
topology: tpu7x:2x2x1
jax: 0.10.0
libtpu: 0.0.40
codegen_flags: <defaults>
</compile_context>

<pallas_src>
import jax
import jax.numpy as jnp
from jax import lax
from jax.experimental import pallas as pl
from jax.experimental.pallas import tpu as pltpu


def basic_block_kernel(x_ref, w1_ref, s1_ref, b1_ref, w2_ref, s2_ref, b2_ref,
                       out_ref, xpad_sc, midpad_sc):
    # x_ref     : (N, H, W*C) f32   input slab (also the residual branch)
    # w1_ref    : (3, W*C, W*C) bf16 conv1 line weights (one block-Toeplitz
    #                                matrix per vertical tap ky)
    # s1/b1     : (1, W*C) f32      folded BN1 scale / bias (tiled over W)
    # w2_ref    : (3, W*C, W*C) bf16 conv2 line weights
    # s2/b2     : (1, W*C) f32      folded BN2 scale / bias
    # out_ref   : (N, H, W*C) f32
    # xpad_sc   : (N, H+2, W*C) f32 VMEM scratch (vertically padded input)
    # midpad_sc : (N, H+2, W*C) f32 VMEM scratch (vertically padded conv1 out)
    N, H, WC = out_ref.shape
    R = N * H

    def conv(pad_sc, w_ref):
        # 3 lane-dense MXU matmuls (one per vertical tap), f32 accumulation.
        acc = None
        for ky in range(3):
            rows = pad_sc[:, ky:ky + H, :].reshape(R, WC).astype(jnp.bfloat16)
            part = jnp.dot(rows, w_ref[ky],
                           preferred_element_type=jnp.float32)
            acc = part if acc is None else acc + part
        return acc

    zero_row = jnp.zeros((N, 1, WC), jnp.float32)

    # ---- conv1 + bn1 + relu ----
    xpad_sc[:, 0:1, :] = zero_row
    xpad_sc[:, H + 1:H + 2, :] = zero_row
    xpad_sc[:, 1:H + 1, :] = x_ref[...]
    mid = jnp.maximum(conv(xpad_sc, w1_ref) * s1_ref[...] + b1_ref[...], 0.0)

    # ---- conv2 + bn2 + residual + relu ----
    midpad_sc[:, 0:1, :] = zero_row
    midpad_sc[:, H + 1:H + 2, :] = zero_row
    midpad_sc[:, 1:H + 1, :] = mid.reshape(N, H, WC)
    out = (conv(midpad_sc, w2_ref) * s2_ref[...] + b2_ref[...]
           + x_ref[...].reshape(R, WC))
    out_ref[...] = jnp.maximum(out, 0.0).reshape(N, H, WC)


def _line_weights(w_hwio, W):
    """(3,3,Cin,Cout) HWIO 3x3 weights -> (3, W*Cin, W*Cout) bf16.

    For each vertical tap ky, Wline[ky] is the block-Toeplitz matrix s.t.
        out_row(h)[wo*C+co] = sum_ky  in_row(h+ky-1)[:] @ Wline[ky][:, wo*C+co]
    with the horizontal padding=1 absorbed into the band structure.
    """
    C = w_hwio.shape[-1]
    wi = jnp.arange(W)[:, None]           # input column index
    wo = jnp.arange(W)[None, :]           # output column index
    kx = wi - wo + 1                      # horizontal tap, padding=1
    valid = (kx >= 0) & (kx <= 2)
    kxc = jnp.clip(kx, 0, 2)
    blk = jnp.where(valid[None, :, :, None, None],
                    w_hwio[:, kxc], 0.0)                  # (3, W, W, Cin, Cout)
    return (blk.transpose(0, 1, 3, 2, 4)
               .reshape(3, W * w_hwio.shape[2], W * C)
               .astype(jnp.bfloat16))


def basic_block_forward(x_nchw, w1, s1, b1, w2, s2, b2):
    """x_nchw: (N, C, H, W) float32.  Conv weights in HWIO.  Returns NCHW."""
    x = jnp.transpose(x_nchw, (0, 2, 3, 1)).astype(jnp.float32)   # NHWC
    N, H, W, Cin = x.shape
    C = w1.shape[-1]
    # downsample=None requires planes == inplanes for the residual add.
    assert Cin == C, "BasicBlock with downsample=None needs inplanes == planes"
    assert w1.shape == (3, 3, Cin, C) and w2.shape == (3, 3, C, C)
    WC = W * C   # lane-dense width (128 for the shapes used here)

    # Pre-built line weights (bf16, MXU-native) and W-tiled BN scale/bias.
    w1l = _line_weights(w1, W)
    w2l = _line_weights(w2, W)
    s1t = jnp.tile(s1.reshape(1, C), (1, W)).astype(jnp.float32)
    b1t = jnp.tile(b1.reshape(1, C), (1, W)).astype(jnp.float32)
    s2t = jnp.tile(s2.reshape(1, C), (1, W)).astype(jnp.float32)
    b2t = jnp.tile(b2.reshape(1, C), (1, W)).astype(jnp.float32)
    x2 = x.reshape(N, H, WC)

    out2 = pl.pallas_call(
        basic_block_kernel,
        out_shape=jax.ShapeDtypeStruct((N, H, WC), jnp.float32),
        grid_spec=pltpu.PrefetchScalarGridSpec(
            num_scalar_prefetch=0,
            grid=(1,),                     # whole batch in one grid step
            in_specs=[
                pl.BlockSpec((N, H, WC), lambda i: (0, 0, 0)),
                pl.BlockSpec((3, WC, WC), lambda i: (0, 0, 0)),
                pl.BlockSpec((1, WC), lambda i: (0, 0)),
                pl.BlockSpec((1, WC), lambda i: (0, 0)),
                pl.BlockSpec((3, WC, WC), lambda i: (0, 0, 0)),
                pl.BlockSpec((1, WC), lambda i: (0, 0)),
                pl.BlockSpec((1, WC), lambda i: (0, 0)),
            ],
            out_specs=pl.BlockSpec((N, H, WC), lambda i: (0, 0, 0)),
            scratch_shapes=[
                pltpu.VMEM((N, H + 2, WC), jnp.float32),   # padded x
                pltpu.VMEM((N, H + 2, WC), jnp.float32),   # padded conv1 out
            ],
        ),
        compiler_params=pltpu.CompilerParams(
            dimension_semantics=("parallel",)),
    )(x2, w1l, s1t, b1t, w2l, s2t, b2t)

    return jnp.transpose(out2.reshape(N, H, W, C), (0, 3, 1, 2))  # NCHW


def reference_forward(x_nchw, w1, s1, b1, w2, s2, b2):
    """Pure-JAX reference with the same bf16-input / f32-accumulate convs."""
    x = jnp.transpose(x_nchw, (0, 2, 3, 1)).astype(jnp.float32)
    dn = ('NHWC', 'HWIO', 'NHWC')
    y = lax.conv_general_dilated(
        x.astype(jnp.bfloat16), w1.astype(jnp.bfloat16), (1, 1), 'SAME',
        dimension_numbers=dn, preferred_element_type=jnp.float32)
    y = jnp.maximum(y * s1 + b1, 0.0)
    z = lax.conv_general_dilated(
        y.astype(jnp.bfloat16), w2.astype(jnp.bfloat16), (1, 1), 'SAME',
        dimension_numbers=dn, preferred_element_type=jnp.float32)
    z = jnp.maximum(z * s2 + b2 + x, 0.0)
    return jnp.transpose(z, (0, 3, 1, 2))


if __name__ == "__main__":
    # BasicBlock(inplanes=8, planes=8, stride=1, downsample=None)
    N, Cin, H, W = 2, 8, 16, 16
    C = Cin
    eps = 1e-5

    key = jax.random.PRNGKey(0)
    k = jax.random.split(key, 8)
    x = jax.random.normal(k[0], (N, Cin, H, W), jnp.float32)

    # conv weights, generated directly in HWIO layout
    w1 = jax.random.normal(k[1], (3, 3, Cin, C), jnp.float32) * 0.1
    w2 = jax.random.normal(k[2], (3, 3, C, C), jnp.float32) * 0.1

    # BN params (inference mode), folded to per-channel scale/bias
    gamma1 = 1.0 + 0.1 * jax.random.normal(k[3], (C,), jnp.float32)
    beta1 = 0.1 * jax.random.normal(k[4], (C,), jnp.float32)
    gamma2 = 1.0 + 0.1 * jax.random.normal(k[5], (C,), jnp.float32)
    beta2 = 0.1 * jax.random.normal(k[6], (C,), jnp.float32)
    mean1 = jnp.zeros((C,), jnp.float32)
    var1 = jnp.ones((C,), jnp.float32)
    mean2 = jnp.zeros((C,), jnp.float32)
    var2 = jnp.ones((C,), jnp.float32)

    s1 = gamma1 / jnp.sqrt(var1 + eps)
    b1 = beta1 - mean1 * s1
    s2 = gamma2 / jnp.sqrt(var2 + eps)
    b2 = beta2 - mean2 * s2

    out = basic_block_forward(x, w1, s1, b1, w2, s2, b2)
    out = jax.block_until_ready(out)

    ref = reference_forward(x, w1, s1, b1, w2, s2, b2)
    assert out.shape == (N, C, H, W)
    err = float(jnp.max(jnp.abs(out - ref)))
    assert jnp.allclose(out, ref, atol=1e-3, rtol=1e-3), (
        f"mismatch vs reference: max abs err = {err}")

    print("KERNEL_OK")
</pallas_src>

<mosaic_0001>
module attributes {stable_mosaic.version = 11 : i64} {
  func.func @basic_block_kernel(%arg0: i32, %arg1: memref<2x16x128xf32, #tpu.memory_space<vmem>>, %arg2: memref<3x128x128xbf16, #tpu.memory_space<vmem>>, %arg3: memref<1x128xf32, #tpu.memory_space<vmem>>, %arg4: memref<1x128xf32, #tpu.memory_space<vmem>>, %arg5: memref<3x128x128xbf16, #tpu.memory_space<vmem>>, %arg6: memref<1x128xf32, #tpu.memory_space<vmem>>, %arg7: memref<1x128xf32, #tpu.memory_space<vmem>>, %arg8: memref<2x16x128xf32, #tpu.memory_space<vmem>>, %arg9: memref<2x18x128xf32, #tpu.memory_space<vmem>>, %arg10: memref<2x18x128xf32, #tpu.memory_space<vmem>>) attributes {dimension_semantics = [#tpu.dimension_semantics<parallel>], iteration_bounds = array<i64: 1>, scalar_prefetch = 0 : i64, scratch_operands = 2 : i64, tpu.core_type = #tpu.core_type<tc>, window_params = [{pipeline_mode = #tpu.pipeline_mode<synchronous>, transform_indices = @transform_0, window_bounds = array<i64: 2, 16, 128>}, {pipeline_mode = #tpu.pipeline_mode<synchronous>, transform_indices = @transform_1, window_bounds = array<i64: 3, 128, 128>}, {pipeline_mode = #tpu.pipeline_mode<synchronous>, transform_indices = @transform_2, window_bounds = array<i64: 1, 128>}, {pipeline_mode = #tpu.pipeline_mode<synchronous>, transform_indices = @transform_3, window_bounds = array<i64: 1, 128>}, {pipeline_mode = #tpu.pipeline_mode<synchronous>, transform_indices = @transform_4, window_bounds = array<i64: 3, 128, 128>}, {pipeline_mode = #tpu.pipeline_mode<synchronous>, transform_indices = @transform_5, window_bounds = array<i64: 1, 128>}, {pipeline_mode = #tpu.pipeline_mode<synchronous>, transform_indices = @transform_6, window_bounds = array<i64: 1, 128>}, {pipeline_mode = #tpu.pipeline_mode<synchronous>, transform_indices = @transform_7, window_bounds = array<i64: 2, 16, 128>}]} {
    %cst = arith.constant 0.000000e+00 : f32
    %0 = vector.broadcast %cst : f32 to vector<2x1x128xf32>
    %c0 = arith.constant 0 : index
    %c0_0 = arith.constant 0 : index
    %c0_1 = arith.constant 0 : index
    %1 = vector.load %arg9[%c0, %c0_0, %c0_1] : memref<2x18x128xf32, #tpu.memory_space<vmem>>, vector<2x1x128xf32>
    tpu.vector_store %arg9[%c0, %c0_0, %c0_1], %0 {strides = array<i32>} : memref<2x18x128xf32, #tpu.memory_space<vmem>>, vector<2x1x128xf32>,
    %c0_2 = arith.constant 0 : index
    %c17 = arith.constant 17 : index
    %c0_3 = arith.constant 0 : index
    %2 = vector.load %arg9[%c0_2, %c17, %c0_3] : memref<2x18x128xf32, #tpu.memory_space<vmem>>, vector<2x1x128xf32>
    tpu.vector_store %arg9[%c0_2, %c17, %c0_3], %0 {strides = array<i32>} : memref<2x18x128xf32, #tpu.memory_space<vmem>>, vector<2x1x128xf32>,
    %c0_4 = arith.constant 0 : index
    %c0_5 = arith.constant 0 : index
    %c0_6 = arith.constant 0 : index
    %3 = vector.load %arg1[%c0_4, %c0_5, %c0_6] : memref<2x16x128xf32, #tpu.memory_space<vmem>>, vector<2x16x128xf32>
    %c0_7 = arith.constant 0 : index
    %c1 = arith.constant 1 : index
    %c0_8 = arith.constant 0 : index
    %4 = vector.load %arg9[%c0_7, %c1, %c0_8] : memref<2x18x128xf32, #tpu.memory_space<vmem>>, vector<2x16x128xf32>
    tpu.vector_store %arg9[%c0_7, %c1, %c0_8], %3 {strides = array<i32>} : memref<2x18x128xf32, #tpu.memory_space<vmem>>, vector<2x16x128xf32>,
    %c0_9 = arith.constant 0 : index
    %c0_10 = arith.constant 0 : index
    %c0_11 = arith.constant 0 : index
    %5 = vector.load %arg9[%c0_9, %c0_10, %c0_11] : memref<2x18x128xf32, #tpu.memory_space<vmem>>, vector<2x16x128xf32>
    %6 = vector.shape_cast %5 : vector<2x16x128xf32> to vector<32x128xf32>
    %7 = arith.truncf %6 : vector<32x128xf32> to vector<32x128xbf16>
    %c0_12 = arith.constant 0 : index
    %c0_13 = arith.constant 0 : index
    %c0_14 = arith.constant 0 : index
    %8 = vector.load %arg2[%c0_12, %c0_13, %c0_14] : memref<3x128x128xbf16, #tpu.memory_space<vmem>>, vector<1x128x128xbf16>
    %9 = vector.shape_cast %8 : vector<1x128x128xbf16> to vector<128x128xbf16>
    %cst_15 = arith.constant dense<0.000000e+00> : vector<32x128xf32>
    %10 = tpu.matmul %7, %9, %cst_15 {dimension_numbers = #tpu.dot_dimension_numbers<[1], [0], [0], [1], [0, 0, 1, 1], [], []>} : vector<32x128xbf16>, vector<128x128xbf16>, vector<32x128xf32> -> vector<32x128xf32>
    %c0_16 = arith.constant 0 : index
    %c1_17 = arith.constant 1 : index
    %c0_18 = arith.constant 0 : index
    %11 = vector.load %arg9[%c0_16, %c1_17, %c0_18] : memref<2x18x128xf32, #tpu.memory_space<vmem>>, vector<2x16x128xf32>
    %12 = vector.shape_cast %11 : vector<2x16x128xf32> to vector<32x128xf32>
    %13 = arith.truncf %12 : vector<32x128xf32> to vector<32x128xbf16>
    %c1_19 = arith.constant 1 : index
    %c0_20 = arith.constant 0 : index
    %c0_21 = arith.constant 0 : index
    %14 = vector.load %arg2[%c1_19, %c0_20, %c0_21] : memref<3x128x128xbf16, #tpu.memory_space<vmem>>, vector<1x128x128xbf16>
    %15 = vector.shape_cast %14 : vector<1x128x128xbf16> to vector<128x128xbf16>
    %cst_22 = arith.constant dense<0.000000e+00> : vector<32x128xf32>
    %16 = tpu.matmul %13, %15, %cst_22 {dimension_numbers = #tpu.dot_dimension_numbers<[1], [0], [0], [1], [0, 0, 1, 1], [], []>} : vector<32x128xbf16>, vector<128x128xbf16>, vector<32x128xf32> -> vector<32x128xf32>
    %17 = arith.addf %10, %16 : vector<32x128xf32>
    %c0_23 = arith.constant 0 : index
    %c2 = arith.constant 2 : index
    %c0_24 = arith.constant 0 : index
    %18 = vector.load %arg9[%c0_23, %c2, %c0_24] : memref<2x18x128xf32, #tpu.memory_space<vmem>>, vector<2x16x128xf32>
    %19 = vector.shape_cast %18 : vector<2x16x128xf32> to vector<32x128xf32>
    %20 = arith.truncf %19 : vector<32x128xf32> to vector<32x128xbf16>
    %c2_25 = arith.constant 2 : index
    %c0_26 = arith.constant 0 : index
    %c0_27 = arith.constant 0 : index
    %21 = vector.load %arg2[%c2_25, %c0_26, %c0_27] : memref<3x128x128xbf16, #tpu.memory_space<vmem>>, vector<1x128x128xbf16>
    %22 = vector.shape_cast %21 : vector<1x128x128xbf16> to vector<128x128xbf16>
    %cst_28 = arith.constant dense<0.000000e+00> : vector<32x128xf32>
    %23 = tpu.matmul %20, %22, %cst_28 {dimension_numbers = #tpu.dot_dimension_numbers<[1], [0], [0], [1], [0, 0, 1, 1], [], []>} : vector<32x128xbf16>, vector<128x128xbf16>, vector<32x128xf32> -> vector<32x128xf32>
    %24 = arith.addf %17, %23 : vector<32x128xf32>
    %c0_29 = arith.constant 0 : index
    %c0_30 = arith.constant 0 : index
    %25 = vector.load %arg3[%c0_29, %c0_30] : memref<1x128xf32, #tpu.memory_space<vmem>>, vector<1x128xf32>
    %26 = vector.broadcast %25 : vector<1x128xf32> to vector<32x128xf32>
    %27 = arith.mulf %24, %26 : vector<32x128xf32>
    %c0_31 = arith.constant 0 : index
    %c0_32 = arith.constant 0 : index
    %28 = vector.load %arg4[%c0_31, %c0_32] : memref<1x128xf32, #tpu.memory_space<vmem>>, vector<1x128xf32>
    %29 = vector.broadcast %28 : vector<1x128xf32> to vector<32x128xf32>
    %30 = arith.addf %27, %29 : vector<32x128xf32>
    %cst_33 = arith.constant 0.000000e+00 : f32
    %31 = vector.broadcast %cst_33 : f32 to vector<32x128xf32>
    %32 = arith.maximumf %30, %31 : vector<32x128xf32>
    %c0_34 = arith.constant 0 : index
    %c0_35 = arith.constant 0 : index
    %c0_36 = arith.constant 0 : index
    %33 = vector.load %arg10[%c0_34, %c0_35, %c0_36] : memref<2x18x128xf32, #tpu.memory_space<vmem>>, vector<2x1x128xf32>
    tpu.vector_store %arg10[%c0_34, %c0_35, %c0_36], %0 {strides = array<i32>} : memref<2x18x128xf32, #tpu.memory_space<vmem>>, vector<2x1x128xf32>,
    %c0_37 = arith.constant 0 : index
    %c17_38 = arith.constant 17 : index
    %c0_39 = arith.constant 0 : index
    %34 = vector.load %arg10[%c0_37, %c17_38, %c0_39] : memref<2x18x128xf32, #tpu.memory_space<vmem>>, vector<2x1x128xf32>
    tpu.vector_store %arg10[%c0_37, %c17_38, %c0_39], %0 {strides = array<i32>} : memref<2x18x128xf32, #tpu.memory_space<vmem>>, vector<2x1x128xf32>,
    %35 = vector.shape_cast %32 : vector<32x128xf32> to vector<2x16x128xf32>
    %c0_40 = arith.constant 0 : index
    %c1_41 = arith.constant 1 : index
    %c0_42 = arith.constant 0 : index
    %36 = vector.load %arg10[%c0_40, %c1_41, %c0_42] : memref<2x18x128xf32, #tpu.memory_space<vmem>>, vector<2x16x128xf32>
    tpu.vector_store %arg10[%c0_40, %c1_41, %c0_42], %35 {strides = array<i32>} : memref<2x18x128xf32, #tpu.memory_space<vmem>>, vector<2x16x128xf32>,
    %c0_43 = arith.constant 0 : index
    %c0_44 = arith.constant 0 : index
    %c0_45 = arith.constant 0 : index
    %37 = vector.load %arg10[%c0_43, %c0_44, %c0_45] : memref<2x18x128xf32, #tpu.memory_space<vmem>>, vector<2x16x128xf32>
    %38 = vector.shape_cast %37 : vector<2x16x128xf32> to vector<32x128xf32>
    %39 = arith.truncf %38 : vector<32x128xf32> to vector<32x128xbf16>
    %c0_46 = arith.constant 0 : index
    %c0_47 = arith.constant 0 : index
    %c0_48 = arith.constant 0 : index
    %40 = vector.load %arg5[%c0_46, %c0_47, %c0_48] : memref<3x128x128xbf16, #tpu.memory_space<vmem>>, vector<1x128x128xbf16>
    %41 = vector.shape_cast %40 : vector<1x128x128xbf16> to vector<128x128xbf16>
    %cst_49 = arith.constant dense<0.000000e+00> : vector<32x128xf32>
    %42 = tpu.matmul %39, %41, %cst_49 {dimension_numbers = #tpu.dot_dimension_numbers<[1], [0], [0], [1], [0, 0, 1, 1], [], []>} : vector<32x128xbf16>, vector<128x128xbf16>, vector<32x128xf32> -> vector<32x128xf32>
    %c0_50 = arith.constant 0 : index
    %c1_51 = arith.constant 1 : index
    %c0_52 = arith.constant 0 : index
    %43 = vector.load %arg10[%c0_50, %c1_51, %c0_52] : memref<2x18x128xf32, #tpu.memory_space<vmem>>, vector<2x16x128xf32>
    %44 = vector.shape_cast %43 : vector<2x16x128xf32> to vector<32x128xf32>
    %45 = arith.truncf %44 : vector<32x128xf32> to vector<32x128xbf16>
    %c1_53 = arith.constant 1 : index
    %c0_54 = arith.constant 0 : index
    %c0_55 = arith.constant 0 : index
    %46 = vector.load %arg5[%c1_53, %c0_54, %c0_55] : memref<3x128x128xbf16, #tpu.memory_space<vmem>>, vector<1x128x128xbf16>
    %47 = vector.shape_cast %46 : vector<1x128x128xbf16> to vector<128x128xbf16>
    %cst_56 = arith.constant dense<0.000000e+00> : vector<32x128xf32>
    %48 = tpu.matmul %45, %47, %cst_56 {dimension_numbers = #tpu.dot_dimension_numbers<[1], [0], [0], [1], [0, 0, 1, 1], [], []>} : vector<32x128xbf16>, vector<128x128xbf16>, vector<32x128xf32> -> vector<32x128xf32>
    %49 = arith.addf %42, %48 : vector<32x128xf32>
    %c0_57 = arith.constant 0 : index
    %c2_58 = arith.constant 2 : index
    %c0_59 = arith.constant 0 : index
    %50 = vector.load %arg10[%c0_57, %c2_58, %c0_59] : memref<2x18x128xf32, #tpu.memory_space<vmem>>, vector<2x16x128xf32>
    %51 = vector.shape_cast %50 : vector<2x16x128xf32> to vector<32x128xf32>
    %52 = arith.truncf %51 : vector<32x128xf32> to vector<32x128xbf16>
    %c2_60 = arith.constant 2 : index
    %c0_61 = arith.constant 0 : index
    %c0_62 = arith.constant 0 : index
    %53 = vector.load %arg5[%c2_60, %c0_61, %c0_62] : memref<3x128x128xbf16, #tpu.memory_space<vmem>>, vector<1x128x128xbf16>
    %54 = vector.shape_cast %53 : vector<1x128x128xbf16> to vector<128x128xbf16>
    %cst_63 = arith.constant dense<0.000000e+00> : vector<32x128xf32>
    %55 = tpu.matmul %52, %54, %cst_63 {dimension_numbers = #tpu.dot_dimension_numbers<[1], [0], [0], [1], [0, 0, 1, 1], [], []>} : vector<32x128xbf16>, vector<128x128xbf16>, vector<32x128xf32> -> vector<32x128xf32>
    %56 = arith.addf %49, %55 : vector<32x128xf32>
    %c0_64 = arith.constant 0 : index
    %c0_65 = arith.constant 0 : index
    %57 = vector.load %arg6[%c0_64, %c0_65] : memref<1x128xf32, #tpu.memory_space<vmem>>, vector<1x128xf32>
    %58 = vector.broadcast %57 : vector<1x128xf32> to vector<32x128xf32>
    %59 = arith.mulf %56, %58 : vector<32x128xf32>
    %c0_66 = arith.constant 0 : index
    %c0_67 = arith.constant 0 : index
    %60 = vector.load %arg7[%c0_66, %c0_67] : memref<1x128xf32, #tpu.memory_space<vmem>>, vector<1x128xf32>
    %61 = vector.broadcast %60 : vector<1x128xf32> to vector<32x128xf32>
    %62 = arith.addf %59, %61 : vector<32x128xf32>
    %c0_68 = arith.constant 0 : index
    %c0_69 = arith.constant 0 : index
    %c0_70 = arith.constant 0 : index
    %63 = vector.load %arg1[%c0_68, %c0_69, %c0_70] : memref<2x16x128xf32, #tpu.memory_space<vmem>>, vector<2x16x128xf32>
    %64 = vector.shape_cast %63 : vector<2x16x128xf32> to vector<32x128xf32>
    %65 = arith.addf %62, %64 : vector<32x128xf32>
    %cst_71 = arith.constant 0.000000e+00 : f32
    %66 = vector.broadcast %cst_71 : f32 to vector<32x128xf32>
    %67 = arith.maximumf %65, %66 : vector<32x128xf32>
    %68 = vector.shape_cast %67 : vector<32x128xf32> to vector<2x16x128xf32>
    %c0_72 = arith.constant 0 : index
    %c0_73 = arith.constant 0 : index
    %c0_74 = arith.constant 0 : index
    %69 = vector.load %arg8[%c0_72, %c0_73, %c0_74] : memref<2x16x128xf32, #tpu.memory_space<vmem>>, vector<2x16x128xf32>
    tpu.vector_store %arg8[%c0_72, %c0_73, %c0_74], %68 {strides = array<i32>} : memref<2x16x128xf32, #tpu.memory_space<vmem>>, vector<2x16x128xf32>,
    return
  }
  func.func @transform_0(%arg0: i32) -> (i32, i32, i32) {
    %c0_i32 = arith.constant 0 : i32
    %c0_i32_0 = arith.constant 0 : i32
    %c0_i32_1 = arith.constant 0 : i32
    %c0_i32_2 = arith.constant 0 : i32
    return %c0_i32, %c0_i32_0, %c0_i32_1 : i32, i32, i32
  }
  func.func @transform_1(%arg0: i32) -> (i32, i32, i32) {
    %c0_i32 = arith.constant 0 : i32
    %c0_i32_0 = arith.constant 0 : i32
    %c0_i32_1 = arith.constant 0 : i32
    %c0_i32_2 = arith.constant 0 : i32
    return %c0_i32, %c0_i32_0, %c0_i32_1 : i32, i32, i32
  }
  func.func @transform_2(%arg0: i32) -> (i32, i32) {
    %c0_i32 = arith.constant 0 : i32
    %c0_i32_0 = arith.constant 0 : i32
    %c0_i32_1 = arith.constant 0 : i32
    return %c0_i32, %c0_i32_0 : i32, i32
  }
  func.func @transform_3(%arg0: i32) -> (i32, i32) {
    %c0_i32 = arith.constant 0 : i32
    %c0_i32_0 = arith.constant 0 : i32
    %c0_i32_1 = arith.constant 0 : i32
    return %c0_i32, %c0_i32_0 : i32, i32
  }
  func.func @transform_4(%arg0: i32) -> (i32, i32, i32) {
    %c0_i32 = arith.constant 0 : i32
    %c0_i32_0 = arith.constant 0 : i32
    %c0_i32_1 = arith.constant 0 : i32
    %c0_i32_2 = arith.constant 0 : i32
    return %c0_i32, %c0_i32_0, %c0_i32_1 : i32, i32, i32
  }
  func.func @transform_5(%arg0: i32) -> (i32, i32) {
    %c0_i32 = arith.constant 0 : i32
    %c0_i32_0 = arith.constant 0 : i32
    %c0_i32_1 = arith.constant 0 : i32
    return %c0_i32, %c0_i32_0 : i32, i32
  }
  func.func @transform_6(%arg0: i32) -> (i32, i32) {
    %c0_i32 = arith.constant 0 : i32
    %c0_i32_0 = arith.constant 0 : i32
    %c0_i32_1 = arith.constant 0 : i32
    return %c0_i32, %c0_i32_0 : i32, i32
  }
  func.func @transform_7(%arg0: i32) -> (i32, i32, i32) {
    %c0_i32 = arith.constant 0 : i32
    %c0_i32_0 = arith.constant 0 : i32
    %c0_i32_1 = arith.constant 0 : i32
    %c0_i32_2 = arith.constant 0 : i32
    return %c0_i32, %c0_i32_0, %c0_i32_1 : i32, i32, i32
  }
}

</mosaic_0001>

<llo_original>
// kernel: tpu_custom_call.1
$region0: #{tpu_custom_call.1}
  #allocation0 [shape = 'u32[]', space=smem, size = 0x4, offset = 0x4, fixed_abs, tag = 'smem constant byte address 0x4 - core index']
  #allocation1 [shape = 'u32[144,128]{1,0:T(1,128)}', space=vmem, size = 0x12000, scoped, tag = 'internal scratch']
  #allocation2 [shape = 'f32[2,18,128]{2,1,0:T(8,128)}', space=vmem, size = 0x6000, scoped, tag = 'scratch operand']
  #allocation3 [shape = 'f32[2,18,128]{2,1,0:T(8,128)}', space=vmem, size = 0x6000, scoped, tag = 'scratch operand']
  %s0 = inlined_call_operand.hbm [shape: f32[2,16,128], index: 0, kind: input, shape index: {}]
  %s1 = inlined_call_operand.hbm [shape: bf16[3,128,128], index: 1, kind: input, shape index: {}]
  %s2 = inlined_call_operand.vmem [shape: f32[1,128], index: 2, kind: input, shape index: {}]
  %s3 = inlined_call_operand.vmem [shape: f32[1,128], index: 3, kind: input, shape index: {}]
  %s4 = inlined_call_operand.hbm [shape: bf16[3,128,128], index: 4, kind: input, shape index: {}]
  %s5 = inlined_call_operand.vmem [shape: f32[1,128], index: 5, kind: input, shape index: {}]
  %s6 = inlined_call_operand.vmem [shape: f32[1,128], index: 6, kind: input, shape index: {}]
  %s7 = inlined_call_operand.hbm [shape: f32[2,16,128], index: 7, kind: output, shape index: {}]
  %s8 = sld [smem:[#allocation0]]
  $region50: #{tpu_custom_call.1} parent=0
    _
  %s10 = ssub.s32 1, %s8
  %s11 = scalar_select 0, %s10, %s8
  $region1: #{tpu_custom_call.1} parent=0
    #allocation4 [shape = 'u8[16384]{0}', space=vmem, size = 0x4000, scoped, tag = 'input window, operand 0, single buffered']
    #allocation5 [shape = 's32[1]{0}', space=sflag, size = 0x4, scoped, tag = 'scoped memory for tpu_custom_call.1']
    #allocation6 [shape = 's32[1]{0}', space=sflag, size = 0x4, scoped, tag = 'scoped memory for tpu_custom_call.1']
    #allocation7 [shape = 'u8[98304]{0}', space=vmem, size = 0x18000, scoped, tag = 'input window, operand 1, single buffered']
    #allocation8 [shape = 's32[1]{0}', space=sflag, size = 0x4, scoped, tag = 'scoped memory for tpu_custom_call.1']
    #allocation9 [shape = 'u8[98304]{0}', space=vmem, size = 0x18000, scoped, tag = 'input window, operand 4, single buffered']
    #allocation10 [shape = 'u8[16384]{0}', space=vmem, size = 0x4000, scoped, tag = 'output window, operand 0, single buffered']
    %12 = vsyncpa [#allocation5], 0
    %13 = vsyncpa [#allocation8], 0
    %14 = vsyncpa [#allocation6], 0
    // Predicated region
    $region2: #{tpu_custom_call.1} parent=1 // pred_check
      _
    $region3: #{tpu_custom_call.1} parent=1 // pred_check_branch
      %16 = sbr.rel (0) target = $region5
    $region4: #{tpu_custom_call.1} parent=1 // pred_region
      %s18 = ssub.s32 512, 512
      %19 = vsyncadd [#allocation5], %s18
      %s20 = sshll.u32 [#allocation4], 4
      %s21 = int_to_ptr.vmem [resolvable:$true] %s20
      %26 = dma.hbm_to_vmem [thread:$0]  %s0, 512, %s21, [#allocation5], 128, 128, 8
    $region5: #{tpu_custom_call.1} parent=1 // pred_fallthru
      _
    // Predicated region
    $region6: #{tpu_custom_call.1} parent=1 // pred_check
      _
    $region7: #{tpu_custom_call.1} parent=1 // pred_check_branch
      %28 = sbr.rel (0) target = $region9
    $region8: #{tpu_custom_call.1} parent=1 // pred_region
      %s30 = ssub.s32 3072, 3072
      %31 = vsyncadd [#allocation8], %s30
      %s32 = sshll.u32 [#allocation7], 4
      %s33 = int_to_ptr.vmem [resolvable:$true] %s32
      %38 = dma.hbm_to_vmem [thread:$0]  %s1, 3072, %s33, [#allocation8], 64, 64, 4
    $region9: #{tpu_custom_call.1} parent=1 // pred_fallthru
      _
    // Predicated region
    $region10: #{tpu_custom_call.1} parent=1 // pred_check
      _
    $region11: #{tpu_custom_call.1} parent=1 // pred_check_branch
      %40 = sbr.rel (0) target = $region13
    $region12: #{tpu_custom_call.1} parent=1 // pred_region
      _
    $region13: #{tpu_custom_call.1} parent=1 // pred_fallthru
      _
    // Predicated region
    $region14: #{tpu_custom_call.1} parent=1 // pred_check
      _
    $region15: #{tpu_custom_call.1} parent=1 // pred_check_branch
      %42 = sbr.rel (0) target = $region17
    $region16: #{tpu_custom_call.1} parent=1 // pred_region
      _
    $region17: #{tpu_custom_call.1} parent=1 // pred_fallthru
      _
    // Predicated region
    $region18: #{tpu_custom_call.1} parent=1 // pred_check
      _
    $region19: #{tpu_custom_call.1} parent=1 // pred_check_branch
      %44 = sbr.rel (0) target = $region21
    $region20: #{tpu_custom_call.1} parent=1 // pred_region
      %s46 = ssub.s32 3072, 3072
      %47 = vsyncadd [#allocation8], %s46
      %s48 = sshll.u32 [#allocation9], 4
      %s49 = int_to_ptr.vmem [resolvable:$true] %s48
      %54 = dma.hbm_to_vmem [thread:$0]  %s4, 3072, %s49, [#allocation8], 64, 64, 4
    $region21: #{tpu_custom_call.1} parent=1 // pred_fallthru
      _
    // Predicated region
    $region22: #{tpu_custom_call.1} parent=1 // pred_check
      _
    $region23: #{tpu_custom_call.1} parent=1 // pred_check_branch
      %56 = sbr.rel (0) target = $region25
    $region24: #{tpu_custom_call.1} parent=1 // pred_region
      _
    $region25: #{tpu_custom_call.1} parent=1 // pred_fallthru
      _
    // Predicated region
    $region26: #{tpu_custom_call.1} parent=1 // pred_check
      _
    $region27: #{tpu_custom_call.1} parent=1 // pred_check_branch
      %58 = sbr.rel (0) target = $region29
    $region28: #{tpu_custom_call.1} parent=1 // pred_region
      _
    $region29: #{tpu_custom_call.1} parent=1 // pred_fallthru
      _
    // Predicated region
    $region30: #{tpu_custom_call.1} parent=1 // pred_check
      _
    $region31: #{tpu_custom_call.1} parent=1 // pred_check_branch
      %60 = sbr.rel (0) target = $region33
    $region32: #{tpu_custom_call.1} parent=1 // pred_region
      %61 = dma.done [#allocation5], 512
    $region33: #{tpu_custom_call.1} parent=1 // pred_fallthru
      _
    // Predicated region
    $region34: #{tpu_custom_call.1} parent=1 // pred_check
      _
    $region35: #{tpu_custom_call.1} parent=1 // pred_check_branch
      %63 = sbr.rel (0) target = $region37
    $region36: #{tpu_custom_call.1} parent=1 // pred_region
      %64 = dma.done [#allocation8], 3072
    $region37: #{tpu_custom_call.1} parent=1 // pred_fallthru
      _
    // Predicated region
    $region38: #{tpu_custom_call.1} parent=1 // pred_check
      _
    $region39: #{tpu_custom_call.1} parent=1 // pred_check_branch
      %66 = sbr.rel (0) target = $region41
    $region40: #{tpu_custom_call.1} parent=1 // pred_region
      %67 = dma.done [#allocation8], 3072
    $region41: #{tpu_custom_call.1} parent=1 // pred_fallthru
      _
    %69 = vst [vmem:[#allocation2] sm:$0x1] 0.0
    %70 = vst [vmem:[#allocation2 + $0x18] sm:$0x1] 0.0
    %71 = vst [vmem:[#allocation2 + $0x11] sm:$0x1] 0.0
    %72 = vst [vmem:[#allocation2 + $0x29] sm:$0x1] 0.0
    %v73 = vld [vmem:[#allocation4] sm:$0xff]
    %v74 = vld [vmem:[#allocation4 + $0x8] sm:$0xff]
    %v75 = vld [vmem:[#allocation4 + $0x10] sm:$0xff]
    %v76 = vld [vmem:[#allocation4 + $0x18] sm:$0xff]
    %77 = vst [vmem:[#allocation2 + $0x1] sm:$0xff] %v73
    %78 = vst [vmem:[#allocation2 + $0x9] sm:$0xff] %v74
    %79 = vst [vmem:[#allocation2 + $0x19] sm:$0xff] %v75
    %80 = vst [vmem:[#allocation2 + $0x21] sm:$0xff] %v76
    %v81 = vld [vmem:[#allocation2] sm:$0xff]
    %v82 = vld [vmem:[#allocation2 + $0x8] sm:$0xff]
    %v83 = vld [vmem:[#allocation2 + $0x18] sm:$0xff]
    %v84 = vld [vmem:[#allocation2 + $0x20] sm:$0xff]
    %v85 = vpack.c.bf16 %v82, %v81
    %v86 = vpack.c.bf16 %v84, %v83
    %v87 = vld [vmem:[#allocation7] sm:$0xf]
    %v88 = vld [vmem:[#allocation7 + $0x4] sm:$0xf]
    %v89 = vld [vmem:[#allocation7 + $0x8] sm:$0xf]
    %v90 = vld [vmem:[#allocation7 + $0xc] sm:$0xf]
    %v91 = vld [vmem:[#allocation7 + $0x10] sm:$0xf]
    %v92 = vld [vmem:[#allocation7 + $0x14] sm:$0xf]
    %v93 = vld [vmem:[#allocation7 + $0x18] sm:$0xf]
    %v94 = vld [vmem:[#allocation7 + $0x1c] sm:$0xf]
    %v95 = vld [vmem:[#allocation7 + $0x20] sm:$0xf]
    %v96 = vld [vmem:[#allocation7 + $0x24] sm:$0xf]
    %v97 = vld [vmem:[#allocation7 + $0x28] sm:$0xf]
    %v98 = vld [vmem:[#allocation7 + $0x2c] sm:$0xf]
    %v99 = vld [vmem:[#allocation7 + $0x30] sm:$0xf]
    %v100 = vld [vmem:[#allocation7 + $0x34] sm:$0xf]
    %v101 = vld [vmem:[#allocation7 + $0x38] sm:$0xf]
    %v102 = vld [vmem:[#allocation7 + $0x3c] sm:$0xf]
    %v103 = vld [vmem:[#allocation2 + $0x1] sm:$0xff]
    %v104 = vld [vmem:[#allocation2 + $0x9] sm:$0xff]
    %v105 = vld [vmem:[#allocation2 + $0x19] sm:$0xff]
    %v106 = vld [vmem:[#allocation2 + $0x21] sm:$0xff]
    %v107 = vpack.c.bf16 %v104, %v103
    %v108 = vpack.c.bf16 %v106, %v105
    %s109 = scalar_lea.vmem [#allocation7], 64
    %v110 = vld [vmem:[%s109] sm:$0xf]
    %v111 = vld [vmem:[%s109 + $0x4] sm:$0xf]
    %v112 = vld [vmem:[%s109 + $0x8] sm:$0xf]
    %v113 = vld [vmem:[%s109 + $0xc] sm:$0xf]
    %v114 = vld [vmem:[%s109 + $0x10] sm:$0xf]
    %v115 = vld [vmem:[%s109 + $0x14] sm:$0xf]
    %v116 = vld [vmem:[%s109 + $0x18] sm:$0xf]
    %v117 = vld [vmem:[%s109 + $0x1c] sm:$0xf]
    %v118 = vld [vmem:[%s109 + $0x20] sm:$0xf]
    %v119 = vld [vmem:[%s109 + $0x24] sm:$0xf]
    %v120 = vld [vmem:[%s109 + $0x28] sm:$0xf]
    %v121 = vld [vmem:[%s109 + $0x2c] sm:$0xf]
    %v122 = vld [vmem:[%s109 + $0x30] sm:$0xf]
    %v123 = vld [vmem:[%s109 + $0x34] sm:$0xf]
    %v124 = vld [vmem:[%s109 + $0x38] sm:$0xf]
    %v125 = vld [vmem:[%s109 + $0x3c] sm:$0xf]
    %v142 = vunpack.c.l.b16 %v110
    %v143 = vunpack.c.l.b16 %v111
    %v144 = vunpack.c.l.b16 %v112
    %v145 = vunpack.c.l.b16 %v113
    %v146 = vunpack.c.l.b16 %v114
    %v147 = vunpack.c.l.b16 %v115
    %v148 = vunpack.c.l.b16 %v116
    %v149 = vunpack.c.l.b16 %v117
    %v150 = vunpack.c.l.b16 %v118
    %v151 = vunpack.c.l.b16 %v119
    %v152 = vunpack.c.l.b16 %v120
    %v153 = vunpack.c.l.b16 %v121
    %v154 = vunpack.c.l.b16 %v122
    %v155 = vunpack.c.l.b16 %v123
    %v156 = vunpack.c.l.b16 %v124
    %v157 = vunpack.c.l.b16 %v125
    %v158 = vpack.c.b16 %v143, %v142
    %v159 = vpack.c.b16 %v145, %v144
    %v160 = vpack.c.b16 %v147, %v146
    %v161 = vpack.c.b16 %v149, %v148
    %v162 = vpack.c.b16 %v151, %v150
    %v163 = vpack.c.b16 %v153, %v152
    %v164 = vpack.c.b16 %v155, %v154
    %v165 = vpack.c.b16 %v157, %v156
    %174 = vmatprep.subr.bf16.mxu0 0
    %175 = vmatpush1.bf16.msra.mxu0 %v158
    %176 = vmatprep.subr.bf16.mxu0 0
    %177 = vmatpush1.bf16.msra.mxu0 %v159
    %178 = vmatprep.subr.bf16.mxu0 0
    %179 = vmatpush1.bf16.msra.mxu0 %v160
    %180 = vmatprep.subr.bf16.mxu0 0
    %181 = vmatpush1.bf16.msra.mxu0 %v161
    %182 = vmatprep.subr.bf16.mxu0 0
    %183 = vmatpush1.bf16.msra.mxu0 %v162
    %184 = vmatprep.subr.bf16.mxu0 0
    %185 = vmatpush1.bf16.msra.mxu0 %v163
    %186 = vmatprep.subr.bf16.mxu0 0
    %187 = vmatpush1.bf16.msra.mxu0 %v164
    %188 = vmatprep.subr.bf16.mxu0 0
    %189 = vmatpush1.bf16.msra.mxu0 %v165
    %190 = vmatprep.subr.bf16.mxu0 0
    %191 = vmatpush1.bf16.msra.mxu0 0
    %192 = vmatprep.subr.bf16.mxu0 0
    %193 = vmatpush1.bf16.msra.mxu0 0
    %194 = vmatprep.subr.bf16.mxu0 0
    %195 = vmatpush1.bf16.msra.mxu0 0
    %196 = vmatprep.subr.bf16.mxu0 0
    %197 = vmatpush1.bf16.msra.mxu0 0
    %198 = vmatprep.subr.bf16.mxu0 0
    %199 = vmatpush1.bf16.msra.mxu0 0
    %200 = vmatprep.subr.bf16.mxu0 0
    %201 = vmatpush1.bf16.msra.mxu0 0
    %202 = vmatprep.subr.bf16.mxu0 0
    %203 = vmatpush1.bf16.msra.mxu0 0
    %204 = vmatprep.subr.bf16.mxu0 0
    %205 = vmatpush1.bf16.msra.mxu0 0
    %206 = vmatprep.mubr.bf16.mxu0 0
    %207 = vmatmul.mubr.bf16.gmra.mrb[0].mxu0 %v107
    %v208 = vpop.f32.mrb[0].mxu0
    %v209 = vadd.f32 0.0, %v208
    %v210 = vpop.f32.mrb[0].mxu0
    %v211 = vpop.f32.mrb[0].mxu0
    %v212 = vadd.f32 0.0, %v211
    %v213 = vpop.f32.mrb[0].mxu0
    %214 = vmatprep.mubr.bf16.mxu0 0
    %215 = vmatmul.mubr.bf16.gmra.mrb[0].mxu0 %v108
    %v216 = vpop.f32.mrb[0].mxu0
    %v217 = vadd.f32 0.0, %v216
    %v218 = vpop.f32.mrb[0].mxu0
    %v219 = vpop.f32.mrb[0].mxu0
    %v220 = vadd.f32 0.0, %v219
    %v221 = vpop.f32.mrb[0].mxu0
    %222 = vdwg.mxu0
    %v239 = vunpack.c.l.b16 %v87
    %v240 = vunpack.c.l.b16 %v88
    %v241 = vunpack.c.l.b16 %v89
    %v242 = vunpack.c.l.b16 %v90
    %v243 = vunpack.c.l.b16 %v91
    %v244 = vunpack.c.l.b16 %v92
    %v245 = vunpack.c.l.b16 %v93
    %v246 = vunpack.c.l.b16 %v94
    %v247 = vunpack.c.l.b16 %v95
    %v248 = vunpack.c.l.b16 %v96
    %v249 = vunpack.c.l.b16 %v97
    %v250 = vunpack.c.l.b16 %v98
    %v251 = vunpack.c.l.b16 %v99
    %v252 = vunpack.c.l.b16 %v100
    %v253 = vunpack.c.l.b16 %v101
    %v254 = vunpack.c.l.b16 %v102
    %v255 = vpack.c.b16 %v240, %v239
    %v256 = vpack.c.b16 %v242, %v241
    %v257 = vpack.c.b16 %v244, %v243
    %v258 = vpack.c.b16 %v246, %v245
    %v259 = vpack.c.b16 %v248, %v247
    %v260 = vpack.c.b16 %v250, %v249
    %v261 = vpack.c.b16 %v252, %v251
    %v262 = vpack.c.b16 %v254, %v253
    %271 = vmatprep.subr.bf16.mxu0 0
    %272 = vmatpush1.bf16.msra.mxu0 %v255
    %273 = vmatprep.subr.bf16.mxu0 0
    %274 = vmatpush1.bf16.msra.mxu0 %v256
    %275 = vmatprep.subr.bf16.mxu0 0
    %276 = vmatpush1.bf16.msra.mxu0 %v257
    %277 = vmatprep.subr.bf16.mxu0 0
    %278 = vmatpush1.bf16.msra.mxu0 %v258
    %279 = vmatprep.subr.bf16.mxu0 0
    %280 = vmatpush1.bf16.msra.mxu0 %v259
    %281 = vmatprep.subr.bf16.mxu0 0
    %282 = vmatpush1.bf16.msra.mxu0 %v260
    %283 = vmatprep.subr.bf16.mxu0 0
    %284 = vmatpush1.bf16.msra.mxu0 %v261
    %285 = vmatprep.subr.bf16.mxu0 0
    %286 = vmatpush1.bf16.msra.mxu0 %v262
    %287 = vmatprep.subr.bf16.mxu0 0
    %288 = vmatpush1.bf16.msra.mxu0 0
    %289 = vmatprep.subr.bf16.mxu0 0
    %290 = vmatpush1.bf16.msra.mxu0 0
    %291 = vmatprep.subr.bf16.mxu0 0
    %292 = vmatpush1.bf16.msra.mxu0 0
    %293 = vmatprep.subr.bf16.mxu0 0
    %294 = vmatpush1.bf16.msra.mxu0 0
    %295 = vmatprep.subr.bf16.mxu0 0
    %296 = vmatpush1.bf16.msra.mxu0 0
    %297 = vmatprep.subr.bf16.mxu0 0
    %298 = vmatpush1.bf16.msra.mxu0 0
    %299 = vmatprep.subr.bf16.mxu0 0
    %300 = vmatpush1.bf16.msra.mxu0 0
    %301 = vmatprep.subr.bf16.mxu0 0
    %302 = vmatpush1.bf16.msra.mxu0 0
    %303 = vmatprep.mubr.bf16.mxu0 0
    %304 = vmatmul.mubr.bf16.gmra.mrb[0].mxu0 %v85
    %v305 = vpop.f32.mrb[0].mxu0
    %v306 = vadd.f32 %v209, %v305
    %v307 = vpop.f32.mrb[0].mxu0
    %v308 = vpop.f32.mrb[0].mxu0
    %v309 = vadd.f32 %v212, %v308
    %v310 = vpop.f32.mrb[0].mxu0
    %311 = vmatprep.mubr.bf16.mxu0 0
    %312 = vmatmul.mubr.bf16.gmra.mrb[0].mxu0 %v86
    %v313 = vpop.f32.mrb[0].mxu0
    %v314 = vadd.f32 %v217, %v313
    %v315 = vpop.f32.mrb[0].mxu0
    %v316 = vpop.f32.mrb[0].mxu0
    %v317 = vadd.f32 %v220, %v316
    %v318 = vpop.f32.mrb[0].mxu0
    %319 = vdwg.mxu0
    %v320 = vld [vmem:[#allocation2 + $0x2] sm:$0xff]
    %v321 = vld [vmem:[#allocation2 + $0xa] sm:$0xff]
    %v322 = vld [vmem:[#allocation2 + $0x1a] sm:$0xff]
    %v323 = vld [vmem:[#allocation2 + $0x22] sm:$0xff]
    %v324 = vpack.c.bf16 %v321, %v320
    %v325 = vpack.c.bf16 %v323, %v322
    %s326 = scalar_lea.vmem [#allocation7], 128
    %v327 = vld [vmem:[%s326] sm:$0xf]
    %v328 = vld [vmem:[%s326 + $0x4] sm:$0xf]
    %v329 = vld [vmem:[%s326 + $0x8] sm:$0xf]
    %v330 = vld [vmem:[%s326 + $0xc] sm:$0xf]
    %v331 = vld [vmem:[%s326 + $0x10] sm:$0xf]
    %v332 = vld [vmem:[%s326 + $0x14] sm:$0xf]
    %v333 = vld [vmem:[%s326 + $0x18] sm:$0xf]
    %v334 = vld [vmem:[%s326 + $0x1c] sm:$0xf]
    %v335 = vld [vmem:[%s326 + $0x20] sm:$0xf]
    %v336 = vld [vmem:[%s326 + $0x24] sm:$0xf]
    %v337 = vld [vmem:[%s326 + $0x28] sm:$0xf]
    %v338 = vld [vmem:[%s326 + $0x2c] sm:$0xf]
    %v339 = vld [vmem:[%s326 + $0x30] sm:$0xf]
    %v340 = vld [vmem:[%s326 + $0x34] sm:$0xf]
    %v341 = vld [vmem:[%s326 + $0x38] sm:$0xf]
    %v342 = vld [vmem:[%s326 + $0x3c] sm:$0xf]
    %v359 = vunpack.c.l.b16 %v327
    %v360 = vunpack.c.l.b16 %v328
    %v361 = vunpack.c.l.b16 %v329
    %v362 = vunpack.c.l.b16 %v330
    %v363 = vunpack.c.l.b16 %v331
    %v364 = vunpack.c.l.b16 %v332
    %v365 = vunpack.c.l.b16 %v333
    %v366 = vunpack.c.l.b16 %v334
    %v367 = vunpack.c.l.b16 %v335
    %v368 = vunpack.c.l.b16 %v336
    %v369 = vunpack.c.l.b16 %v337
    %v370 = vunpack.c.l.b16 %v338
    %v371 = vunpack.c.l.b16 %v339
    %v372 = vunpack.c.l.b16 %v340
    %v373 = vunpack.c.l.b16 %v341
    %v374 = vunpack.c.l.b16 %v342
    %v375 = vpack.c.b16 %v360, %v359
    %v376 = vpack.c.b16 %v362, %v361
    %v377 = vpack.c.b16 %v364, %v363
    %v378 = vpack.c.b16 %v366, %v365
    %v379 = vpack.c.b16 %v368, %v367
    %v380 = vpack.c.b16 %v370, %v369
    %v381 = vpack.c.b16 %v372, %v371
    %v382 = vpack.c.b16 %v374, %v373
    %391 = vmatprep.subr.bf16.mxu0 0
    %392 = vmatpush1.bf16.msra.mxu0 %v375
    %393 = vmatprep.subr.bf16.mxu0 0
    %394 = vmatpush1.bf16.msra.mxu0 %v376
    %395 = vmatprep.subr.bf16.mxu0 0
    %396 = vmatpush1.bf16.msra.mxu0 %v377
    %397 = vmatprep.subr.bf16.mxu0 0
    %398 = vmatpush1.bf16.msra.mxu0 %v378
    %399 = vmatprep.subr.bf16.mxu0 0
    %400 = vmatpush1.bf16.msra.mxu0 %v379
    %401 = vmatprep.subr.bf16.mxu0 0
    %402 = vmatpush1.bf16.msra.mxu0 %v380
    %403 = vmatprep.subr.bf16.mxu0 0
    %404 = vmatpush1.bf16.msra.mxu0 %v381
    %405 = vmatprep.subr.bf16.mxu0 0
    %406 = vmatpush1.bf16.msra.mxu0 %v382
    %407 = vmatprep.subr.bf16.mxu0 0
    %408 = vmatpush1.bf16.msra.mxu0 0
    %409 = vmatprep.subr.bf16.mxu0 0
    %410 = vmatpush1.bf16.msra.mxu0 0
    %411 = vmatprep.subr.bf16.mxu0 0
    %412 = vmatpush1.bf16.msra.mxu0 0
    %413 = vmatprep.subr.bf16.mxu0 0
    %414 = vmatpush1.bf16.msra.mxu0 0
    %415 = vmatprep.subr.bf16.mxu0 0
    %416 = vmatpush1.bf16.msra.mxu0 0
    %417 = vmatprep.subr.bf16.mxu0 0
    %418 = vmatpush1.bf16.msra.mxu0 0
    %419 = vmatprep.subr.bf16.mxu0 0
    %420 = vmatpush1.bf16.msra.mxu0 0
    %421 = vmatprep.subr.bf16.mxu0 0
    %422 = vmatpush1.bf16.msra.mxu0 0
    %423 = vmatprep.mubr.bf16.mxu0 0
    %424 = vmatmul.mubr.bf16.gmra.mrb[0].mxu0 %v324
    %v425 = vpop.f32.mrb[0].mxu0
    %v426 = vadd.f32 0.0, %v425
    %v427 = vpop.f32.mrb[0].mxu0
    %v428 = vpop.f32.mrb[0].mxu0
    %v429 = vadd.f32 0.0, %v428
    %v430 = vpop.f32.mrb[0].mxu0
    %431 = vmatprep.mubr.bf16.mxu0 0
    %432 = vmatmul.mubr.bf16.gmra.mrb[0].mxu0 %v325
    %v433 = vpop.f32.mrb[0].mxu0
    %v434 = vadd.f32 0.0, %v433
    %v435 = vpop.f32.mrb[0].mxu0
    %v436 = vpop.f32.mrb[0].mxu0
    %v437 = vadd.f32 0.0, %v436
    %v438 = vpop.f32.mrb[0].mxu0
    %439 = vdwg.mxu0
    %v440 = vadd.f32 %v306, %v426
    %v441 = vadd.f32 %v309, %v429
    %v442 = vadd.f32 %v314, %v434
    %v443 = vadd.f32 %v317, %v437
    %v444 = vld [vmem:[%s2] sm:$0x1]
    %v446 = vlaneseq
    %v447 = vshrl.u32 %v446, 7
    %v448 = vsub.s32 0, %v447
    %v449 = vrot.slane %v444, %v448
    %v451 = vmul.f32 %v440, %v449
    %v452 = vmul.f32 %v441, %v449
    %v453 = vmul.f32 %v442, %v449
    %v454 = vmul.f32 %v443, %v449
    %v455 = vld [vmem:[%s3] sm:$0x1]
    %v457 = vlaneseq
    %v458 = vshrl.u32 %v457, 7
    %v459 = vsub.s32 0, %v458
    %v460 = vrot.slane %v455, %v459
    %v462 = vadd.f32 %v451, %v460
    %v463 = vadd.f32 %v452, %v460
    %v464 = vadd.f32 %v453, %v460
    %v465 = vadd.f32 %v454, %v460
    %v466 = vmax.f32 %v462, 0.0
    %v467 = vmax.f32 %v463, 0.0
    %v468 = vmax.f32 %v464, 0.0
    %v469 = vmax.f32 %v465, 0.0
    %470 = vst [vmem:[#allocation3] sm:$0x1] 0.0
    %471 = vst [vmem:[#allocation3 + $0x18] sm:$0x1] 0.0
    %472 = vst [vmem:[#allocation3 + $0x11] sm:$0x1] 0.0
    %473 = vst [vmem:[#allocation3 + $0x29] sm:$0x1] 0.0
    %474 = vst [vmem:[#allocation3 + $0x1] sm:$0xff] %v466
    %475 = vst [vmem:[#allocation3 + $0x9] sm:$0xff] %v467
    %476 = vst [vmem:[#allocation3 + $0x19] sm:$0xff] %v468
    %477 = vst [vmem:[#allocation3 + $0x21] sm:$0xff] %v469
    %v478 = vld [vmem:[#allocation3] sm:$0xff]
    %v479 = vld [vmem:[#allocation3 + $0x8] sm:$0xff]
    %v480 = vld [vmem:[#allocation3 + $0x18] sm:$0xff]
    %v481 = vld [vmem:[#allocation3 + $0x20] sm:$0xff]
    %v482 = vpack.c.bf16 %v479, %v478
    %v483 = vpack.c.bf16 %v481, %v480
    %v484 = vld [vmem:[#allocation9] sm:$0xf]
    %v485 = vld [vmem:[#allocation9 + $0x4] sm:$0xf]
    %v486 = vld [vmem:[#allocation9 + $0x8] sm:$0xf]
    %v487 = vld [vmem:[#allocation9 + $0xc] sm:$0xf]
    %v488 = vld [vmem:[#allocation9 + $0x10] sm:$0xf]
    %v489 = vld [vmem:[#allocation9 + $0x14] sm:$0xf]
    %v490 = vld [vmem:[#allocation9 + $0x18] sm:$0xf]
    %v491 = vld [vmem:[#allocation9 + $0x1c] sm:$0xf]
    %v492 = vld [vmem:[#allocation9 + $0x20] sm:$0xf]
    %v493 = vld [vmem:[#allocation9 + $0x24] sm:$0xf]
    %v494 = vld [vmem:[#allocation9 + $0x28] sm:$0xf]
    %v495 = vld [vmem:[#allocation9 + $0x2c] sm:$0xf]
    %v496 = vld [vmem:[#allocation9 + $0x30] sm:$0xf]
    %v497 = vld [vmem:[#allocation9 + $0x34] sm:$0xf]
    %v498 = vld [vmem:[#allocation9 + $0x38] sm:$0xf]
    %v499 = vld [vmem:[#allocation9 + $0x3c] sm:$0xf]
    %v500 = vld [vmem:[#allocation3 + $0x1] sm:$0xff]
    %v501 = vld [vmem:[#allocation3 + $0x9] sm:$0xff]
    %v502 = vld [vmem:[#allocation3 + $0x19] sm:$0xff]
    %v503 = vld [vmem:[#allocation3 + $0x21] sm:$0xff]
    %v504 = vpack.c.bf16 %v501, %v500
    %v505 = vpack.c.bf16 %v503, %v502
    %s506 = scalar_lea.vmem [#allocation9], 64
    %v507 = vld [vmem:[%s506] sm:$0xf]
    %v508 = vld [vmem:[%s506 + $0x4] sm:$0xf]
    %v509 = vld [vmem:[%s506 + $0x8] sm:$0xf]
    %v510 = vld [vmem:[%s506 + $0xc] sm:$0xf]
    %v511 = vld [vmem:[%s506 + $0x10] sm:$0xf]
    %v512 = vld [vmem:[%s506 + $0x14] sm:$0xf]
    %v513 = vld [vmem:[%s506 + $0x18] sm:$0xf]
    %v514 = vld [vmem:[%s506 + $0x1c] sm:$0xf]
    %v515 = vld [vmem:[%s506 + $0x20] sm:$0xf]
    %v516 = vld [vmem:[%s506 + $0x24] sm:$0xf]
    %v517 = vld [vmem:[%s506 + $0x28] sm:$0xf]
    %v518 = vld [vmem:[%s506 + $0x2c] sm:$0xf]
    %v519 = vld [vmem:[%s506 + $0x30] sm:$0xf]
    %v520 = vld [vmem:[%s506 + $0x34] sm:$0xf]
    %v521 = vld [vmem:[%s506 + $0x38] sm:$0xf]
    %v522 = vld [vmem:[%s506 + $0x3c] sm:$0xf]
    %v539 = vunpack.c.l.b16 %v507
    %v540 = vunpack.c.l.b16 %v508
    %v541 = vunpack.c.l.b16 %v509
    %v542 = vunpack.c.l.b16 %v510
    %v543 = vunpack.c.l.b16 %v511
    %v544 = vunpack.c.l.b16 %v512
    %v545 = vunpack.c.l.b16 %v513
    %v546 = vunpack.c.l.b16 %v514
    %v547 = vunpack.c.l.b16 %v515
    %v548 = vunpack.c.l.b16 %v516
    %v549 = vunpack.c.l.b16 %v517
    %v550 = vunpack.c.l.b16 %v518
    %v551 = vunpack.c.l.b16 %v519
    %v552 = vunpack.c.l.b16 %v520
    %v553 = vunpack.c.l.b16 %v521
    %v554 = vunpack.c.l.b16 %v522
    %v555 = vpack.c.b16 %v540, %v539
    %v556 = vpack.c.b16 %v542, %v541
    %v557 = vpack.c.b16 %v544, %v543
    %v558 = vpack.c.b16 %v546, %v545
    %v559 = vpack.c.b16 %v548, %v547
    %v560 = vpack.c.b16 %v550, %v549
    %v561 = vpack.c.b16 %v552, %v551
    %v562 = vpack.c.b16 %v554, %v553
    %571 = vmatprep.subr.bf16.mxu0 0
    %572 = vmatpush1.bf16.msra.mxu0 %v555
    %573 = vmatprep.subr.bf16.mxu0 0
    %574 = vmatpush1.bf16.msra.mxu0 %v556
    %575 = vmatprep.subr.bf16.mxu0 0
    %576 = vmatpush1.bf16.msra.mxu0 %v557
    %577 = vmatprep.subr.bf16.mxu0 0
    %578 = vmatpush1.bf16.msra.mxu0 %v558
    %579 = vmatprep.subr.bf16.mxu0 0
    %580 = vmatpush1.bf16.msra.mxu0 %v559
    %581 = vmatprep.subr.bf16.mxu0 0
    %582 = vmatpush1.bf16.msra.mxu0 %v560
    %583 = vmatprep.subr.bf16.mxu0 0
    %584 = vmatpush1.bf16.msra.mxu0 %v561
    %585 = vmatprep.subr.bf16.mxu0 0
    %586 = vmatpush1.bf16.msra.mxu0 %v562
    %587 = vmatprep.subr.bf16.mxu0 0
    %588 = vmatpush1.bf16.msra.mxu0 0
    %589 = vmatprep.subr.bf16.mxu0 0
    %590 = vmatpush1.bf16.msra.mxu0 0
    %591 = vmatprep.subr.bf16.mxu0 0
    %592 = vmatpush1.bf16.msra.mxu0 0
    %593 = vmatprep.subr.bf16.mxu0 0
    %594 = vmatpush1.bf16.msra.mxu0 0
    %595 = vmatprep.subr.bf16.mxu0 0
    %596 = vmatpush1.bf16.msra.mxu0 0
    %597 = vmatprep.subr.bf16.mxu0 0
    %598 = vmatpush1.bf16.msra.mxu0 0
    %599 = vmatprep.subr.bf16.mxu0 0
    %600 = vmatpush1.bf16.msra.mxu0 0
    %601 = vmatprep.subr.bf16.mxu0 0
    %602 = vmatpush1.bf16.msra.mxu0 0
    %603 = vmatprep.mubr.bf16.mxu0 0
    %604 = vmatmul.mubr.bf16.gmra.mrb[0].mxu0 %v504
    %v605 = vpop.f32.mrb[0].mxu0
    %v606 = vadd.f32 0.0, %v605
    %v607 = vpop.f32.mrb[0].mxu0
    %v608 = vpop.f32.mrb[0].mxu0
    %v609 = vadd.f32 0.0, %v608
    %v610 = vpop.f32.mrb[0].mxu0
    %611 = vmatprep.mubr.bf16.mxu0 0
    %612 = vmatmul.mubr.bf16.gmra.mrb[0].mxu0 %v505
    %v613 = vpop.f32.mrb[0].mxu0
    %v614 = vadd.f32 0.0, %v613
    %v615 = vpop.f32.mrb[0].mxu0
    %v616 = vpop.f32.mrb[0].mxu0
    %v617 = vadd.f32 0.0, %v616
    %v618 = vpop.f32.mrb[0].mxu0
    %619 = vdwg.mxu0
    %v636 = vunpack.c.l.b16 %v484
    %v637 = vunpack.c.l.b16 %v485
    %v638 = vunpack.c.l.b16 %v486
    %v639 = vunpack.c.l.b16 %v487
    %v640 = vunpack.c.l.b16 %v488
    %v641 = vunpack.c.l.b16 %v489
    %v642 = vunpack.c.l.b16 %v490
    %v643 = vunpack.c.l.b16 %v491
    %v644 = vunpack.c.l.b16 %v492
    %v645 = vunpack.c.l.b16 %v493
    %v646 = vunpack.c.l.b16 %v494
    %v647 = vunpack.c.l.b16 %v495
    %v648 = vunpack.c.l.b16 %v496
    %v649 = vunpack.c.l.b16 %v497
    %v650 = vunpack.c.l.b16 %v498
    %v651 = vunpack.c.l.b16 %v499
    %v652 = vpack.c.b16 %v637, %v636
    %v653 = vpack.c.b16 %v639, %v638
    %v654 = vpack.c.b16 %v641, %v640
    %v655 = vpack.c.b16 %v643, %v642
    %v656 = vpack.c.b16 %v645, %v644
    %v657 = vpack.c.b16 %v647, %v646
    %v658 = vpack.c.b16 %v649, %v648
    %v659 = vpack.c.b16 %v651, %v650
    %668 = vmatprep.subr.bf16.mxu0 0
    %669 = vmatpush1.bf16.msra.mxu0 %v652
    %670 = vmatprep.subr.bf16.mxu0 0
    %671 = vmatpush1.bf16.msra.mxu0 %v653
    %672 = vmatprep.subr.bf16.mxu0 0
    %673 = vmatpush1.bf16.msra.mxu0 %v654
    %674 = vmatprep.subr.bf16.mxu0 0
    %675 = vmatpush1.bf16.msra.mxu0 %v655
    %676 = vmatprep.subr.bf16.mxu0 0
    %677 = vmatpush1.bf16.msra.mxu0 %v656
    %678 = vmatprep.subr.bf16.mxu0 0
    %679 = vmatpush1.bf16.msra.mxu0 %v657
    %680 = vmatprep.subr.bf16.mxu0 0
    %681 = vmatpush1.bf16.msra.mxu0 %v658
    %682 = vmatprep.subr.bf16.mxu0 0
    %683 = vmatpush1.bf16.msra.mxu0 %v659
    %684 = vmatprep.subr.bf16.mxu0 0
    %685 = vmatpush1.bf16.msra.mxu0 0
    %686 = vmatprep.subr.bf16.mxu0 0
    %687 = vmatpush1.bf16.msra.mxu0 0
    %688 = vmatprep.subr.bf16.mxu0 0
    %689 = vmatpush1.bf16.msra.mxu0 0
    %690 = vmatprep.subr.bf16.mxu0 0
    %691 = vmatpush1.bf16.msra.mxu0 0
    %692 = vmatprep.subr.bf16.mxu0 0
    %693 = vmatpush1.bf16.msra.mxu0 0
    %694 = vmatprep.subr.bf16.mxu0 0
    %695 = vmatpush1.bf16.msra.mxu0 0
    %696 = vmatprep.subr.bf16.mxu0 0
    %697 = vmatpush1.bf16.msra.mxu0 0
    %698 = vmatprep.subr.bf16.mxu0 0
    %699 = vmatpush1.bf16.msra.mxu0 0
    %700 = vmatprep.mubr.bf16.mxu0 0
    %701 = vmatmul.mubr.bf16.gmra.mrb[0].mxu0 %v482
    %v702 = vpop.f32.mrb[0].mxu0
    %v703 = vadd.f32 %v606, %v702
    %v704 = vpop.f32.mrb[0].mxu0
    %v705 = vpop.f32.mrb[0].mxu0
    %v706 = vadd.f32 %v609, %v705
    %v707 = vpop.f32.mrb[0].mxu0
    %708 = vmatprep.mubr.bf16.mxu0 0
    %709 = vmatmul.mubr.bf16.gmra.mrb[0].mxu0 %v483
    %v710 = vpop.f32.mrb[0].mxu0
    %v711 = vadd.f32 %v614, %v710
    %v712 = vpop.f32.mrb[0].mxu0
    %v713 = vpop.f32.mrb[0].mxu0
    %v714 = vadd.f32 %v617, %v713
    %v715 = vpop.f32.mrb[0].mxu0
    %716 = vdwg.mxu0
    %v717 = vld [vmem:[#allocation3 + $0x2] sm:$0xff]
    %v718 = vld [vmem:[#allocation3 + $0xa] sm:$0xff]
    %v719 = vld [vmem:[#allocation3 + $0x1a] sm:$0xff]
    %v720 = vld [vmem:[#allocation3 + $0x22] sm:$0xff]
    %v721 = vpack.c.bf16 %v718, %v717
    %v722 = vpack.c.bf16 %v720, %v719
    %s723 = scalar_lea.vmem [#allocation9], 128
    %v724 = vld [vmem:[%s723] sm:$0xf]
    %v725 = vld [vmem:[%s723 + $0x4] sm:$0xf]
    %v726 = vld [vmem:[%s723 + $0x8] sm:$0xf]
    %v727 = vld [vmem:[%s723 + $0xc] sm:$0xf]
    %v728 = vld [vmem:[%s723 + $0x10] sm:$0xf]
    %v729 = vld [vmem:[%s723 + $0x14] sm:$0xf]
    %v730 = vld [vmem:[%s723 + $0x18] sm:$0xf]
    %v731 = vld [vmem:[%s723 + $0x1c] sm:$0xf]
    %v732 = vld [vmem:[%s723 + $0x20] sm:$0xf]
    %v733 = vld [vmem:[%s723 + $0x24] sm:$0xf]
    %v734 = vld [vmem:[%s723 + $0x28] sm:$0xf]
    %v735 = vld [vmem:[%s723 + $0x2c] sm:$0xf]
    %v736 = vld [vmem:[%s723 + $0x30] sm:$0xf]
    %v737 = vld [vmem:[%s723 + $0x34] sm:$0xf]
    %v738 = vld [vmem:[%s723 + $0x38] sm:$0xf]
    %v739 = vld [vmem:[%s723 + $0x3c] sm:$0xf]
    %v756 = vunpack.c.l.b16 %v724
    %v757 = vunpack.c.l.b16 %v725
    %v758 = vunpack.c.l.b16 %v726
    %v759 = vunpack.c.l.b16 %v727
    %v760 = vunpack.c.l.b16 %v728
    %v761 = vunpack.c.l.b16 %v729
    %v762 = vunpack.c.l.b16 %v730
    %v763 = vunpack.c.l.b16 %v731
    %v764 = vunpack.c.l.b16 %v732
    %v765 = vunpack.c.l.b16 %v733
    %v766 = vunpack.c.l.b16 %v734
    %v767 = vunpack.c.l.b16 %v735
    %v768 = vunpack.c.l.b16 %v736
    %v769 = vunpack.c.l.b16 %v737
    %v770 = vunpack.c.l.b16 %v738
    %v771 = vunpack.c.l.b16 %v739
    %v772 = vpack.c.b16 %v757, %v756
    %v773 = vpack.c.b16 %v759, %v758
    %v774 = vpack.c.b16 %v761, %v760
    %v775 = vpack.c.b16 %v763, %v762
    %v776 = vpack.c.b16 %v765, %v764
    %v777 = vpack.c.b16 %v767, %v766
    %v778 = vpack.c.b16 %v769, %v768
    %v779 = vpack.c.b16 %v771, %v770
    %788 = vmatprep.subr.bf16.mxu0 0
    %789 = vmatpush1.bf16.msra.mxu0 %v772
    %790 = vmatprep.subr.bf16.mxu0 0
    %791 = vmatpush1.bf16.msra.mxu0 %v773
    %792 = vmatprep.subr.bf16.mxu0 0
    %793 = vmatpush1.bf16.msra.mxu0 %v774
    %794 = vmatprep.subr.bf16.mxu0 0
    %795 = vmatpush1.bf16.msra.mxu0 %v775
    %796 = vmatprep.subr.bf16.mxu0 0
    %797 = vmatpush1.bf16.msra.mxu0 %v776
    %798 = vmatprep.subr.bf16.mxu0 0
    %799 = vmatpush1.bf16.msra.mxu0 %v777
    %800 = vmatprep.subr.bf16.mxu0 0
    %801 = vmatpush1.bf16.msra.mxu0 %v778
    %802 = vmatprep.subr.bf16.mxu0 0
    %803 = vmatpush1.bf16.msra.mxu0 %v779
    %804 = vmatprep.subr.bf16.mxu0 0
    %805 = vmatpush1.bf16.msra.mxu0 0
    %806 = vmatprep.subr.bf16.mxu0 0
    %807 = vmatpush1.bf16.msra.mxu0 0
    %808 = vmatprep.subr.bf16.mxu0 0
    %809 = vmatpush1.bf16.msra.mxu0 0
    %810 = vmatprep.subr.bf16.mxu0 0
    %811 = vmatpush1.bf16.msra.mxu0 0
    %812 = vmatprep.subr.bf16.mxu0 0
    %813 = vmatpush1.bf16.msra.mxu0 0
    %814 = vmatprep.subr.bf16.mxu0 0
    %815 = vmatpush1.bf16.msra.mxu0 0
    %816 = vmatprep.subr.bf16.mxu0 0
    %817 = vmatpush1.bf16.msra.mxu0 0
    %818 = vmatprep.subr.bf16.mxu0 0
    %819 = vmatpush1.bf16.msra.mxu0 0
    %820 = vmatprep.mubr.bf16.mxu0 0
    %821 = vmatmul.mubr.bf16.gmra.mrb[0].mxu0 %v721
    %v822 = vpop.f32.mrb[0].mxu0
    %v823 = vadd.f32 0.0, %v822
    %v824 = vpop.f32.mrb[0].mxu0
    %v825 = vpop.f32.mrb[0].mxu0
    %v826 = vadd.f32 0.0, %v825
    %v827 = vpop.f32.mrb[0].mxu0
    %828 = vmatprep.mubr.bf16.mxu0 0
    %829 = vmatmul.mubr.bf16.gmra.mrb[0].mxu0 %v722
    %v830 = vpop.f32.mrb[0].mxu0
    %v831 = vadd.f32 0.0, %v830
    %v832 = vpop.f32.mrb[0].mxu0
    %v833 = vpop.f32.mrb[0].mxu0
    %v834 = vadd.f32 0.0, %v833
    %v835 = vpop.f32.mrb[0].mxu0
    %836 = vdwg.mxu0
    %v837 = vadd.f32 %v703, %v823
    %v838 = vadd.f32 %v706, %v826
    %v839 = vadd.f32 %v711, %v831
    %v840 = vadd.f32 %v714, %v834
    %v841 = vld [vmem:[%s5] sm:$0x1]
    %v843 = vlaneseq
    %v844 = vshrl.u32 %v843, 7
    %v845 = vsub.s32 0, %v844
    %v846 = vrot.slane %v841, %v845
    %v848 = vmul.f32 %v837, %v846
    %v849 = vmul.f32 %v838, %v846
    %v850 = vmul.f32 %v839, %v846
    %v851 = vmul.f32 %v840, %v846
    %v852 = vld [vmem:[%s6] sm:$0x1]
    %v854 = vlaneseq
    %v855 = vshrl.u32 %v854, 7
    %v856 = vsub.s32 0, %v855
    %v857 = vrot.slane %v852, %v856
    %v859 = vadd.f32 %v848, %v857
    %v860 = vadd.f32 %v849, %v857
    %v861 = vadd.f32 %v850, %v857
    %v862 = vadd.f32 %v851, %v857
    %v863 = vld [vmem:[#allocation4] sm:$0xff]
    %v864 = vld [vmem:[#allocation4 + $0x8] sm:$0xff]
    %v865 = vld [vmem:[#allocation4 + $0x10] sm:$0xff]
    %v866 = vld [vmem:[#allocation4 + $0x18] sm:$0xff]
    %v867 = vadd.f32 %v859, %v863
    %v868 = vadd.f32 %v860, %v864
    %v869 = vadd.f32 %v861, %v865
    %v870 = vadd.f32 %v862, %v866
    %v871 = vmax.f32 %v867, 0.0
    %v872 = vmax.f32 %v868, 0.0
    %v873 = vmax.f32 %v869, 0.0
    %v874 = vmax.f32 %v870, 0.0
    %875 = vst [vmem:[#allocation10] sm:$0xff] %v871
    %876 = vst [vmem:[#allocation10 + $0x8] sm:$0xff] %v872
    %877 = vst [vmem:[#allocation10 + $0x10] sm:$0xff] %v873
    %878 = vst [vmem:[#allocation10 + $0x18] sm:$0xff] %v874
    // Predicated region
    $region42: #{tpu_custom_call.1} parent=1 // pred_check
      _
    $region43: #{tpu_custom_call.1} parent=1 // pred_check_branch
      %880 = sbr.rel (0) target = $region45
    $region44: #{tpu_custom_call.1} parent=1 // pred_region
      %s882 = ssub.s32 512, 512
      %883 = vsyncadd [#allocation6], %s882
      %s884 = sshll.u32 [#allocation10], 4
      %s885 = int_to_ptr.vmem [resolvable:$true] %s884
      %890 = dma.vmem_to_hbm [thread:$0]  %s885, 512, %s7, [#allocation6], 128, 128, 8
    $region45: #{tpu_custom_call.1} parent=1 // pred_fallthru
      _
    // Predicated region
    $region46: #{tpu_custom_call.1} parent=1 // pred_check
      _
    $region47: #{tpu_custom_call.1} parent=1 // pred_check_branch
      %892 = sbr.rel (0) target = $region49
    $region48: #{tpu_custom_call.1} parent=1 // pred_region
      %893 = dma.done [#allocation6], 512
    $region49: #{tpu_custom_call.1} parent=1 // pred_fallthru
      _
    %894 = vsyncpa [#allocation5], 1
    %895 = vsyncpa [#allocation8], 1
    %896 = vsyncpa [#allocation6], 1

</llo_original>
